<compile_context>
chip_gen: v7x
topology: tpu7x:2x2x1
jax: 0.10.0
libtpu: 0.0.40
codegen_flags: <defaults>
</compile_context>

<pallas_src>
import jax
import jax.numpy as jnp
from jax.experimental import pallas as pl
from jax.experimental.pallas import tpu as pltpu

FEATURES = 16
HIDDEN = 512
_TB_MAX = 1024            # largest batch tile ever picked


def _round_up(n, m):
    return ((n + m - 1) // m) * m


def _vmem_caps():
    """(budget, ceiling) bytes derived from the running chip's physical VMEM
    (v7x: 64 MiB per TensorCore; v5e/v6e: 128 MiB)."""
    phys = 64 << 20                                    # conservative fallback
    try:
        phys = int(getattr(pltpu.get_tpu_info(), "vmem_capacity_bytes", phys))
    except Exception:
        pass
    ceiling = min(int(phys * 0.70), 96 << 20)          # leave compiler headroom
    return int(ceiling * 0.90), ceiling


def _vmem_estimate(tb, in_features, weight_bytes):
    """Rough VMEM footprint: 2x-buffered batch tiles + 2x-buffered resident
    weights + f32/bf16 activation temporaries + fixed margin."""
    f32, bf16 = 4, 2
    tiles = 2 * tb * (in_features * f32                # x (double-buffered)
                      + FEATURES * f32                 # eps
                      + in_features * f32              # out
                      + 2 * FEATURES * f32)            # mulv
    acts = tb * (HIDDEN * (f32 + bf16) * 2             # h1/h3 (+ bf16 copies)
                 + in_features * (f32 + bf16)          # logits + bf16 x
                 + 4 * FEATURES * f32)                 # y2 / mu / lv / z
    return 2 * weight_bytes + tiles + acts + (2 << 20)


def _pick_tb(B, in_features, weight_bytes, budget):
    """Batch tile: full batch as one block for small B; otherwise balanced
    tiles giving an even number of grid steps (>=2, feeds both v7x TCs),
    up to 1024 rows, shrunk only if the VMEM estimate exceeds the budget."""
    if B <= 128:
        return B                                       # single full-array block
    n_steps = 2 * pl.cdiv(B, 2 * _TB_MAX)              # even, >= 2
    tb = _round_up(pl.cdiv(B, n_steps), 8)
    while _vmem_estimate(tb, in_features, weight_bytes) > budget and tb > 128:
        n_steps += 2
        tb = _round_up(pl.cdiv(B, n_steps), 8)
    return tb


def lvae_kernel(x_ref, w1_ref, b1_ref, w2_ref, b2_ref, w3_ref, b3_ref,
                w4_ref, b4_ref, eps_ref, out_ref, mulv_ref):
    # fc1 + ReLU  (bf16 operands, f32 MXU accumulation)
    h1 = jnp.dot(x_ref[...].astype(jnp.bfloat16), w1_ref[...],
                 preferred_element_type=jnp.float32) + b1_ref[...]
    h1 = jnp.maximum(h1, 0.0)

    # fc2 (fused mu / log_var heads) — kept in f32: tiny matmul, and mu/log_var
    # are returned outputs (KL term), so f32 accuracy here is nearly free.
    y2 = jnp.dot(h1, w2_ref[...], preferred_element_type=jnp.float32) + b2_ref[...]
    mu = y2[:, :FEATURES]
    lv = y2[:, FEATURES:]

    # reparameterize: z = mu + eps * exp(0.5 * log_var)   (f32 elementwise)
    z = mu + eps_ref[...] * jnp.exp(0.5 * lv)

    # fc3 + ReLU
    h3 = jnp.dot(z.astype(jnp.bfloat16), w3_ref[...],
                 preferred_element_type=jnp.float32) + b3_ref[...]
    h3 = jnp.maximum(h3, 0.0)

    # fc4 + sigmoid (exp and reciprocal both go to the EUP slot)
    logits = jnp.dot(h3.astype(jnp.bfloat16), w4_ref[...],
                     preferred_element_type=jnp.float32) + b4_ref[...]
    out_ref[...] = pl.reciprocal(1.0 + jnp.exp(-logits), approx=True)
    mulv_ref[...] = y2


def prepare_params(params):
    """One-time weight prep (outside the hot path): transpose to [in, out];
    fc1/fc3/fc4 weights to bf16, fc2 weight stays f32; biases f32 [1, N]."""
    w1, b1, w2, b2, w3, b3, w4, b4 = params
    r = lambda b: b.reshape(1, -1).astype(jnp.float32)
    return (w1.T.astype(jnp.bfloat16), r(b1),
            w2.T.astype(jnp.float32), r(b2),
            w3.T.astype(jnp.bfloat16), r(b3),
            w4.T.astype(jnp.bfloat16), r(b4))


@jax.jit
def lvae_forward(x, prepared, eps):
    """x: [B, in_features] f32 (or bf16), eps: [B, 16] f32,
    prepared: prepare_params(...). Returns (out, mu, log_var), all f32."""
    B, in_features = x.shape
    w1t, b1, w2t, b2, w3t, b3, w4t, b4 = prepared
    weight_bytes = sum(int(a.size) * a.dtype.itemsize
                       for a in (w1t, b1, w2t, b2, w3t, b3, w4t, b4))

    budget, ceiling = _vmem_caps()
    TB = _pick_tb(B, in_features, weight_bytes, budget)
    grid = (pl.cdiv(B, TB),)          # ragged final tile: masked edge writeback

    batch_spec = lambda cols: pl.BlockSpec((TB, cols), lambda i: (i, 0))
    resident = lambda a: pl.BlockSpec(a.shape, lambda i: (0, 0))  # VMEM-resident

    # Advisory cost estimate for XLA scheduling around the custom call.
    flops = 2 * B * (in_features * HIDDEN + HIDDEN * 2 * FEATURES
                     + FEATURES * HIDDEN + HIDDEN * in_features)
    transcendentals = B * (FEATURES + 2 * in_features)   # exp(reparam) + sigmoid
    bytes_accessed = (B * in_features * x.dtype.itemsize   # x read
                      + B * FEATURES * 4                   # eps read
                      + weight_bytes                       # params (once)
                      + B * in_features * 4                # out write
                      + B * 2 * FEATURES * 4)              # mulv write

    vmem_needed = _vmem_estimate(TB, in_features, weight_bytes)
    cp_kwargs = dict(dimension_semantics=("parallel",))
    if vmem_needed > (14 << 20):        # v5e default scoped limit is only 16 MiB
        cp_kwargs["vmem_limit_bytes"] = int(min(max(vmem_needed, 16 << 20), ceiling))

    out, mulv = pl.pallas_call(
        lvae_kernel,
        grid=grid,
        out_shape=(
            jax.ShapeDtypeStruct((B, in_features), jnp.float32),
            jax.ShapeDtypeStruct((B, 2 * FEATURES), jnp.float32),
        ),
        in_specs=[
            batch_spec(in_features),            # x
            resident(w1t), resident(b1),        # fc1
            resident(w2t), resident(b2),        # fc2 (fused heads, f32)
            resident(w3t), resident(b3),        # fc3
            resident(w4t), resident(b4),        # fc4
            batch_spec(FEATURES),               # eps
        ],
        out_specs=(
            pl.BlockSpec((TB, in_features), lambda i: (i, 0)),
            pl.BlockSpec((TB, 2 * FEATURES), lambda i: (i, 0)),
        ),
        compiler_params=pltpu.CompilerParams(**cp_kwargs),
        cost_estimate=pl.CostEstimate(flops=flops,
                                      transcendentals=transcendentals,
                                      bytes_accessed=bytes_accessed),
    )(x, w1t, b1, w2t, b2, w3t, b3, w4t, b4, eps)

    mu = mulv[:, :FEATURES]
    log_var = mulv[:, FEATURES:]
    return out, mu, log_var


def init_params(key, in_features):
    """Deterministic init mirroring nn.Linear default (uniform +/- 1/sqrt(fan_in))."""
    def linear(key, fan_in, fan_out):
        kw, kb = jax.random.split(key)
        bound = 1.0 / jnp.sqrt(fan_in)
        w = jax.random.uniform(kw, (fan_out, fan_in), jnp.float32, -bound, bound)
        b = jax.random.uniform(kb, (fan_out,), jnp.float32, -bound, bound)
        return w, b

    k1, k2, k3, k4 = jax.random.split(key, 4)
    w1, b1 = linear(k1, in_features, HIDDEN)
    w2, b2 = linear(k2, HIDDEN, FEATURES * 2)
    w3, b3 = linear(k3, FEATURES, HIDDEN)
    w4, b4 = linear(k4, HIDDEN, in_features)
    return (w1, b1, w2, b2, w3, b3, w4, b4)


def lvae_reference(x, params, eps):
    """Pure-JAX (f32) reference implementing the PyTorch forward exactly."""
    w1, b1, w2, b2, w3, b3, w4, b4 = params
    h = jnp.maximum(x @ w1.T + b1, 0.0)
    h = h @ w2.T + b2
    h = h.reshape(-1, 2, FEATURES)
    mu, log_var = h[:, 0, :], h[:, 1, :]
    z = mu + eps * jnp.exp(0.5 * log_var)
    h = jnp.maximum(z @ w3.T + b3, 0.0)
    out = jax.nn.sigmoid(h @ w4.T + b4)
    return out, mu, log_var


if __name__ == "__main__":
    key = jax.random.PRNGKey(0)
    k_param, k_x, k_eps, k_x2, k_eps2 = jax.random.split(key, 5)

    B, in_features = 4, 64
    params = init_params(k_param, in_features)
    prepared = prepare_params(params)

    x = jax.random.normal(k_x, (B, in_features), jnp.float32)
    # eps for reparameterize (torch.randn_like) generated deterministically here.
    eps = jax.random.normal(k_eps, (B, FEATURES), jnp.float32)

    out, mu, log_var = lvae_forward(x, prepared, eps)
    jax.block_until_ready((out, mu, log_var))

    ref_out, ref_mu, ref_lv = lvae_reference(x, params, eps)
    assert out.shape == (B, in_features) and mu.shape == (B, FEATURES)
    assert log_var.shape == (B, FEATURES)
    # bf16 matmul operands (fc1/fc3/fc4) with f32 accumulation -> loose tolerances.
    assert jnp.allclose(out, ref_out, atol=2e-2, rtol=2e-2)
    assert jnp.allclose(mu, ref_mu, atol=2e-2, rtol=2e-2)
    assert jnp.allclose(log_var, ref_lv, atol=2e-2, rtol=2e-2)

    # Exercise the multi-step grid with a ragged final tile (no pad/slice path).
    B2 = 300
    x2 = jax.random.normal(k_x2, (B2, in_features), jnp.float32)
    eps2 = jax.random.normal(k_eps2, (B2, FEATURES), jnp.float32)
    out2, mu2, lv2 = lvae_forward(x2, prepared, eps2)
    jax.block_until_ready((out2, mu2, lv2))
    ref_out2, ref_mu2, ref_lv2 = lvae_reference(x2, params, eps2)
    assert out2.shape == (B2, in_features)
    assert jnp.allclose(out2, ref_out2, atol=2e-2, rtol=2e-2)
    assert jnp.allclose(mu2, ref_mu2, atol=2e-2, rtol=2e-2)
    assert jnp.allclose(lv2, ref_lv2, atol=2e-2, rtol=2e-2)

    print("KERNEL_OK")
</pallas_src>

<mosaic_0001>
module attributes {stable_mosaic.version = 11 : i64} {
  func.func @lvae_kernel(%arg0: i32, %arg1: memref<4x64xf32, #tpu.memory_space<vmem>>, %arg2: memref<64x512xbf16, #tpu.memory_space<vmem>>, %arg3: memref<1x512xf32, #tpu.memory_space<vmem>>, %arg4: memref<512x32xf32, #tpu.memory_space<vmem>>, %arg5: memref<1x32xf32, #tpu.memory_space<vmem>>, %arg6: memref<16x512xbf16, #tpu.memory_space<vmem>>, %arg7: memref<1x512xf32, #tpu.memory_space<vmem>>, %arg8: memref<512x64xbf16, #tpu.memory_space<vmem>>, %arg9: memref<1x64xf32, #tpu.memory_space<vmem>>, %arg10: memref<4x16xf32, #tpu.memory_space<vmem>>, %arg11: memref<4x64xf32, #tpu.memory_space<vmem>>, %arg12: memref<4x32xf32, #tpu.memory_space<vmem>>) attributes {dimension_semantics = [#tpu.dimension_semantics<parallel>], iteration_bounds = array<i64: 1>, scalar_prefetch = 0 : i64, scratch_operands = 0 : i64, tpu.core_type = #tpu.core_type<tc>, window_params = [{transform_indices = @transform_0, window_bounds = array<i64: 4, 64>}, {pipeline_mode = #tpu.pipeline_mode<synchronous>, transform_indices = @transform_1, window_bounds = array<i64: 64, 512>}, {pipeline_mode = #tpu.pipeline_mode<synchronous>, transform_indices = @transform_2, window_bounds = array<i64: 1, 512>}, {pipeline_mode = #tpu.pipeline_mode<synchronous>, transform_indices = @transform_3, window_bounds = array<i64: 512, 32>}, {pipeline_mode = #tpu.pipeline_mode<synchronous>, transform_indices = @transform_4, window_bounds = array<i64: 1, 32>}, {pipeline_mode = #tpu.pipeline_mode<synchronous>, transform_indices = @transform_5, window_bounds = array<i64: 16, 512>}, {pipeline_mode = #tpu.pipeline_mode<synchronous>, transform_indices = @transform_6, window_bounds = array<i64: 1, 512>}, {pipeline_mode = #tpu.pipeline_mode<synchronous>, transform_indices = @transform_7, window_bounds = array<i64: 512, 64>}, {pipeline_mode = #tpu.pipeline_mode<synchronous>, transform_indices = @transform_8, window_bounds = array<i64: 1, 64>}, {transform_indices = @transform_9, window_bounds = array<i64: 4, 16>}, {transform_indices = @transform_10, window_bounds = array<i64: 4, 64>}, {transform_indices = @transform_11, window_bounds = array<i64: 4, 32>}]} {
    %c0 = arith.constant 0 : index
    %c0_0 = arith.constant 0 : index
    %0 = vector.load %arg1[%c0, %c0_0] : memref<4x64xf32, #tpu.memory_space<vmem>>, vector<4x64xf32>
    %1 = arith.truncf %0 : vector<4x64xf32> to vector<4x64xbf16>
    %c0_1 = arith.constant 0 : index
    %c0_2 = arith.constant 0 : index
    %2 = vector.load %arg2[%c0_1, %c0_2] : memref<64x512xbf16, #tpu.memory_space<vmem>>, vector<64x512xbf16>
    %cst = arith.constant dense<0.000000e+00> : vector<4x512xf32>
    %3 = tpu.matmul %1, %2, %cst {dimension_numbers = #tpu.dot_dimension_numbers<[1], [0], [0], [1], [0, 0, 1, 1], [], []>} : vector<4x64xbf16>, vector<64x512xbf16>, vector<4x512xf32> -> vector<4x512xf32>
    %c0_3 = arith.constant 0 : index
    %c0_4 = arith.constant 0 : index
    %4 = vector.load %arg3[%c0_3, %c0_4] : memref<1x512xf32, #tpu.memory_space<vmem>>, vector<1x512xf32>
    %5 = vector.broadcast %4 : vector<1x512xf32> to vector<4x512xf32>
    %6 = arith.addf %3, %5 : vector<4x512xf32>
    %cst_5 = arith.constant 0.000000e+00 : f32
    %7 = vector.broadcast %cst_5 : f32 to vector<4x512xf32>
    %8 = arith.maximumf %6, %7 : vector<4x512xf32>
    %c0_6 = arith.constant 0 : index
    %c0_7 = arith.constant 0 : index
    %9 = vector.load %arg4[%c0_6, %c0_7] : memref<512x32xf32, #tpu.memory_space<vmem>>, vector<512x32xf32>
    %cst_8 = arith.constant dense<0.000000e+00> : vector<4x32xf32>
    %10 = tpu.matmul %8, %9, %cst_8 {dimension_numbers = #tpu.dot_dimension_numbers<[1], [0], [0], [1], [0, 0, 1, 1], [], []>} : vector<4x512xf32>, vector<512x32xf32>, vector<4x32xf32> -> vector<4x32xf32>
    %c0_9 = arith.constant 0 : index
    %c0_10 = arith.constant 0 : index
    %11 = vector.load %arg5[%c0_9, %c0_10] : memref<1x32xf32, #tpu.memory_space<vmem>>, vector<1x32xf32>
    %12 = vector.broadcast %11 : vector<1x32xf32> to vector<4x32xf32>
    %13 = arith.addf %10, %12 : vector<4x32xf32>
    %14 = vector.extract_strided_slice %13 {offsets = [0, 0], sizes = [4, 16], strides = [1, 1]} : vector<4x32xf32> to vector<4x16xf32>
    %15 = vector.extract_strided_slice %13 {offsets = [0, 16], sizes = [4, 16], strides = [1, 1]} : vector<4x32xf32> to vector<4x16xf32>
    %c0_11 = arith.constant 0 : index
    %c0_12 = arith.constant 0 : index
    %16 = vector.load %arg10[%c0_11, %c0_12] : memref<4x16xf32, #tpu.memory_space<vmem>>, vector<4x16xf32>
    %cst_13 = arith.constant 5.000000e-01 : f32
    %17 = vector.broadcast %cst_13 : f32 to vector<4x16xf32>
    %18 = arith.mulf %17, %15 : vector<4x16xf32>
    %19 = math.exp %18 : vector<4x16xf32>
    %20 = arith.mulf %16, %19 : vector<4x16xf32>
    %21 = arith.addf %14, %20 : vector<4x16xf32>
    %22 = arith.truncf %21 : vector<4x16xf32> to vector<4x16xbf16>
    %c0_14 = arith.constant 0 : index
    %c0_15 = arith.constant 0 : index
    %23 = vector.load %arg6[%c0_14, %c0_15] : memref<16x512xbf16, #tpu.memory_space<vmem>>, vector<16x512xbf16>
    %cst_16 = arith.constant dense<0.000000e+00> : vector<4x512xf32>
    %24 = tpu.matmul %22, %23, %cst_16 {dimension_numbers = #tpu.dot_dimension_numbers<[1], [0], [0], [1], [0, 0, 1, 1], [], []>} : vector<4x16xbf16>, vector<16x512xbf16>, vector<4x512xf32> -> vector<4x512xf32>
    %c0_17 = arith.constant 0 : index
    %c0_18 = arith.constant 0 : index
    %25 = vector.load %arg7[%c0_17, %c0_18] : memref<1x512xf32, #tpu.memory_space<vmem>>, vector<1x512xf32>
    %26 = vector.broadcast %25 : vector<1x512xf32> to vector<4x512xf32>
    %27 = arith.addf %24, %26 : vector<4x512xf32>
    %cst_19 = arith.constant 0.000000e+00 : f32
    %28 = vector.broadcast %cst_19 : f32 to vector<4x512xf32>
    %29 = arith.maximumf %27, %28 : vector<4x512xf32>
    %30 = arith.truncf %29 : vector<4x512xf32> to vector<4x512xbf16>
    %c0_20 = arith.constant 0 : index
    %c0_21 = arith.constant 0 : index
    %31 = vector.load %arg8[%c0_20, %c0_21] : memref<512x64xbf16, #tpu.memory_space<vmem>>, vector<512x64xbf16>
    %cst_22 = arith.constant dense<0.000000e+00> : vector<4x64xf32>
    %32 = tpu.matmul %30, %31, %cst_22 {dimension_numbers = #tpu.dot_dimension_numbers<[1], [0], [0], [1], [0, 0, 1, 1], [], []>} : vector<4x512xbf16>, vector<512x64xbf16>, vector<4x64xf32> -> vector<4x64xf32>
    %c0_23 = arith.constant 0 : index
    %c0_24 = arith.constant 0 : index
    %33 = vector.load %arg9[%c0_23, %c0_24] : memref<1x64xf32, #tpu.memory_space<vmem>>, vector<1x64xf32>
    %34 = vector.broadcast %33 : vector<1x64xf32> to vector<4x64xf32>
    %35 = arith.addf %32, %34 : vector<4x64xf32>
    %cst_25 = arith.constant 0.000000e+00 : f32
    %36 = vector.broadcast %cst_25 : f32 to vector<4x64xf32>
    %37 = arith.subf %36, %35 : vector<4x64xf32>
    %38 = math.exp %37 : vector<4x64xf32>
    %cst_26 = arith.constant 1.000000e+00 : f32
    %39 = vector.broadcast %cst_26 : f32 to vector<4x64xf32>
    %40 = arith.addf %39, %38 : vector<4x64xf32>
    %41 = tpu.reciprocal %40 {approx = true} : vector<4x64xf32> -> vector<4x64xf32>
    %c0_27 = arith.constant 0 : index
    %c0_28 = arith.constant 0 : index
    %42 = vector.load %arg11[%c0_27, %c0_28] : memref<4x64xf32, #tpu.memory_space<vmem>>, vector<4x64xf32>
    tpu.vector_store %arg11[%c0_27, %c0_28], %41 {strides = array<i32>} : memref<4x64xf32, #tpu.memory_space<vmem>>, vector<4x64xf32>,
    %c0_29 = arith.constant 0 : index
    %c0_30 = arith.constant 0 : index
    %43 = vector.load %arg12[%c0_29, %c0_30] : memref<4x32xf32, #tpu.memory_space<vmem>>, vector<4x32xf32>
    tpu.vector_store %arg12[%c0_29, %c0_30], %13 {strides = array<i32>} : memref<4x32xf32, #tpu.memory_space<vmem>>, vector<4x32xf32>,
    return
  }
  func.func @transform_0(%arg0: i32) -> (i32, i32) {
    %c0_i32 = arith.constant 0 : i32
    %c0_i32_0 = arith.constant 0 : i32
    return %arg0, %c0_i32 : i32, i32
  }
  func.func @transform_1(%arg0: i32) -> (i32, i32) {
    %c0_i32 = arith.constant 0 : i32
    %c0_i32_0 = arith.constant 0 : i32
    %c0_i32_1 = arith.constant 0 : i32
    return %c0_i32, %c0_i32_0 : i32, i32
  }
  func.func @transform_2(%arg0: i32) -> (i32, i32) {
    %c0_i32 = arith.constant 0 : i32
    %c0_i32_0 = arith.constant 0 : i32
    %c0_i32_1 = arith.constant 0 : i32
    return %c0_i32, %c0_i32_0 : i32, i32
  }
  func.func @transform_3(%arg0: i32) -> (i32, i32) {
    %c0_i32 = arith.constant 0 : i32
    %c0_i32_0 = arith.constant 0 : i32
    %c0_i32_1 = arith.constant 0 : i32
    return %c0_i32, %c0_i32_0 : i32, i32
  }
  func.func @transform_4(%arg0: i32) -> (i32, i32) {
    %c0_i32 = arith.constant 0 : i32
    %c0_i32_0 = arith.constant 0 : i32
    %c0_i32_1 = arith.constant 0 : i32
    return %c0_i32, %c0_i32_0 : i32, i32
  }
  func.func @transform_5(%arg0: i32) -> (i32, i32) {
    %c0_i32 = arith.constant 0 : i32
    %c0_i32_0 = arith.constant 0 : i32
    %c0_i32_1 = arith.constant 0 : i32
    return %c0_i32, %c0_i32_0 : i32, i32
  }
  func.func @transform_6(%arg0: i32) -> (i32, i32) {
    %c0_i32 = arith.constant 0 : i32
    %c0_i32_0 = arith.constant 0 : i32
    %c0_i32_1 = arith.constant 0 : i32
    return %c0_i32, %c0_i32_0 : i32, i32
  }
  func.func @transform_7(%arg0: i32) -> (i32, i32) {
    %c0_i32 = arith.constant 0 : i32
    %c0_i32_0 = arith.constant 0 : i32
    %c0_i32_1 = arith.constant 0 : i32
    return %c0_i32, %c0_i32_0 : i32, i32
  }
  func.func @transform_8(%arg0: i32) -> (i32, i32) {
    %c0_i32 = arith.constant 0 : i32
    %c0_i32_0 = arith.constant 0 : i32
    %c0_i32_1 = arith.constant 0 : i32
    return %c0_i32, %c0_i32_0 : i32, i32
  }
  func.func @transform_9(%arg0: i32) -> (i32, i32) {
    %c0_i32 = arith.constant 0 : i32
    %c0_i32_0 = arith.constant 0 : i32
    return %arg0, %c0_i32 : i32, i32
  }
  func.func @transform_10(%arg0: i32) -> (i32, i32) {
    %c0_i32 = arith.constant 0 : i32
    %c0_i32_0 = arith.constant 0 : i32
    return %arg0, %c0_i32 : i32, i32
  }
  func.func @transform_11(%arg0: i32) -> (i32, i32) {
    %c0_i32 = arith.constant 0 : i32
    %c0_i32_0 = arith.constant 0 : i32
    return %arg0, %c0_i32 : i32, i32
  }
}

</mosaic_0001>

<llo_original>
// kernel: lvae_forward.1
$region0: #{lvae_forward.1}
  #allocation0 [shape = 'u32[]', space=smem, size = 0x4, offset = 0x4, fixed_abs, tag = 'smem constant byte address 0x4 - core index']
  #allocation1 [shape = 'u32[144,128]{1,0:T(1,128)}', space=vmem, size = 0x12000, scoped, tag = 'internal scratch']
  %s0 = inlined_call_operand.vmem [shape: f32[4,64], index: 0, kind: input, shape index: {}]
  %s1 = inlined_call_operand.vmem [shape: bf16[64,512], index: 1, kind: input, shape index: {}]
  %s2 = inlined_call_operand.vmem [shape: f32[1,512], index: 2, kind: input, shape index: {}]
  %s3 = inlined_call_operand.vmem [shape: f32[512,32], index: 3, kind: input, shape index: {}]
  %s4 = inlined_call_operand.vmem [shape: f32[1,32], index: 4, kind: input, shape index: {}]
  %s5 = inlined_call_operand.vmem [shape: bf16[16,512], index: 5, kind: input, shape index: {}]
  %s6 = inlined_call_operand.vmem [shape: f32[1,512], index: 6, kind: input, shape index: {}]
  %s7 = inlined_call_operand.vmem [shape: bf16[512,64], index: 7, kind: input, shape index: {}]
  %s8 = inlined_call_operand.vmem [shape: f32[1,64], index: 8, kind: input, shape index: {}]
  %s9 = inlined_call_operand.vmem [shape: f32[4,16], index: 9, kind: input, shape index: {}]
  %s10 = inlined_call_operand.hbm [shape: f32[4,64], index: 10, kind: output, shape index: {0}]
  %s11 = inlined_call_operand.vmem [shape: f32[4,32], index: 11, kind: output, shape index: {1}]
  %12 = xla_tuple %s10, %s11
  %s13 = sld [smem:[#allocation0]]
  $region58: #{lvae_forward.1} parent=0
    _
  %s15 = ssub.s32 1, %s13
  %s16 = scalar_select 0, %s15, %s13
  $region1: #{lvae_forward.1} parent=0
    #allocation2 [shape = 'u8[2048]{0}', space=vmem, size = 0x800, scoped, tag = 'output window, operand 0, single buffered']
    #allocation3 [shape = 's32[1]{0}', space=sflag, size = 0x4, scoped, tag = 'scoped memory for lvae_forward.1']
    %17 = vsyncpa [#allocation3], 0
    // Predicated region
    $region2: #{lvae_forward.1} parent=1 // pred_check
      _
    $region3: #{lvae_forward.1} parent=1 // pred_check_branch
      %19 = sbr.rel (0) target = $region5
    $region4: #{lvae_forward.1} parent=1 // pred_region
      _
    $region5: #{lvae_forward.1} parent=1 // pred_fallthru
      _
    // Predicated region
    $region6: #{lvae_forward.1} parent=1 // pred_check
      _
    $region7: #{lvae_forward.1} parent=1 // pred_check_branch
      %21 = sbr.rel (0) target = $region9
    $region8: #{lvae_forward.1} parent=1 // pred_region
      _
    $region9: #{lvae_forward.1} parent=1 // pred_fallthru
      _
    // Predicated region
    $region10: #{lvae_forward.1} parent=1 // pred_check
      _
    $region11: #{lvae_forward.1} parent=1 // pred_check_branch
      %23 = sbr.rel (0) target = $region13
    $region12: #{lvae_forward.1} parent=1 // pred_region
      _
    $region13: #{lvae_forward.1} parent=1 // pred_fallthru
      _
    // Predicated region
    $region14: #{lvae_forward.1} parent=1 // pred_check
      _
    $region15: #{lvae_forward.1} parent=1 // pred_check_branch
      %25 = sbr.rel (0) target = $region17
    $region16: #{lvae_forward.1} parent=1 // pred_region
      _
    $region17: #{lvae_forward.1} parent=1 // pred_fallthru
      _
    // Predicated region
    $region18: #{lvae_forward.1} parent=1 // pred_check
      _
    $region19: #{lvae_forward.1} parent=1 // pred_check_branch
      %27 = sbr.rel (0) target = $region21
    $region20: #{lvae_forward.1} parent=1 // pred_region
      _
    $region21: #{lvae_forward.1} parent=1 // pred_fallthru
      _
    // Predicated region
    $region22: #{lvae_forward.1} parent=1 // pred_check
      _
    $region23: #{lvae_forward.1} parent=1 // pred_check_branch
      %29 = sbr.rel (0) target = $region25
    $region24: #{lvae_forward.1} parent=1 // pred_region
      _
    $region25: #{lvae_forward.1} parent=1 // pred_fallthru
      _
    // Predicated region
    $region26: #{lvae_forward.1} parent=1 // pred_check
      _
    $region27: #{lvae_forward.1} parent=1 // pred_check_branch
      %31 = sbr.rel (0) target = $region29
    $region28: #{lvae_forward.1} parent=1 // pred_region
      _
    $region29: #{lvae_forward.1} parent=1 // pred_fallthru
      _
    // Predicated region
    $region30: #{lvae_forward.1} parent=1 // pred_check
      _
    $region31: #{lvae_forward.1} parent=1 // pred_check_branch
      %33 = sbr.rel (0) target = $region33
    $region32: #{lvae_forward.1} parent=1 // pred_region
      _
    $region33: #{lvae_forward.1} parent=1 // pred_fallthru
      _
    // Predicated region
    $region34: #{lvae_forward.1} parent=1 // pred_check
      _
    $region35: #{lvae_forward.1} parent=1 // pred_check_branch
      %35 = sbr.rel (0) target = $region37
    $region36: #{lvae_forward.1} parent=1 // pred_region
      _
    $region37: #{lvae_forward.1} parent=1 // pred_fallthru
      _
    // Predicated region
    $region38: #{lvae_forward.1} parent=1 // pred_check
      _
    $region39: #{lvae_forward.1} parent=1 // pred_check_branch
      %37 = sbr.rel (0) target = $region41
    $region40: #{lvae_forward.1} parent=1 // pred_region
      _
    $region41: #{lvae_forward.1} parent=1 // pred_fallthru
      _
    %v39 = vld [vmem:[%s0] sm:$0xf]
    %v40 = vpack.c.bf16 %v39, %v39
    %v41 = vld [vmem:[%s1] sm:$0xff]
    %v42 = vld [vmem:[%s1 + $0x8] sm:$0xff]
    %v43 = vld [vmem:[%s1 + $0x10] sm:$0xff]
    %v44 = vld [vmem:[%s1 + $0x18] sm:$0xff]
    %v45 = vld [vmem:[%s1 + $0x20] sm:$0xff]
    %v46 = vld [vmem:[%s1 + $0x28] sm:$0xff]
    %v47 = vld [vmem:[%s1 + $0x30] sm:$0xff]
    %v48 = vld [vmem:[%s1 + $0x38] sm:$0xff]
    %v49 = vld [vmem:[%s1 + $0x40] sm:$0xff]
    %v50 = vld [vmem:[%s1 + $0x48] sm:$0xff]
    %v51 = vld [vmem:[%s1 + $0x50] sm:$0xff]
    %v52 = vld [vmem:[%s1 + $0x58] sm:$0xff]
    %v53 = vld [vmem:[%s1 + $0x60] sm:$0xff]
    %v54 = vld [vmem:[%s1 + $0x68] sm:$0xff]
    %v55 = vld [vmem:[%s1 + $0x70] sm:$0xff]
    %v56 = vld [vmem:[%s1 + $0x78] sm:$0xff]
    %v57 = vld [vmem:[%s2] sm:$0xf]
    %v59 = vlaneseq
    %v60 = vshrl.u32 %v59, 7
    %v61 = vsub.s32 0, %v60
    %v62 = vrot.slane %v57, %v61
    %v63 = vlaneseq
    %v64 = vshrl.u32 %v63, 7
    %v65 = vsub.s32 1, %v64
    %v66 = vrot.slane %v57, %v65
    %v67 = vlaneseq
    %v68 = vshrl.u32 %v67, 7
    %v69 = vsub.s32 2, %v68
    %v70 = vrot.slane %v57, %v69
    %v71 = vlaneseq
    %v72 = vshrl.u32 %v71, 7
    %v73 = vsub.s32 3, %v72
    %v74 = vrot.slane %v57, %v73
    %v95 = vunpack.c.l.b16 %v41
    %v96 = vunpack.c.h.b16 %v41
    %v97 = vunpack.c.l.b16 %v42
    %v98 = vunpack.c.h.b16 %v42
    %v99 = vunpack.c.l.b16 %v43
    %v100 = vunpack.c.h.b16 %v43
    %v101 = vunpack.c.l.b16 %v44
    %v102 = vunpack.c.h.b16 %v44
    %v103 = vunpack.c.l.b16 %v45
    %v104 = vunpack.c.h.b16 %v45
    %v105 = vunpack.c.l.b16 %v46
    %v106 = vunpack.c.h.b16 %v46
    %v107 = vunpack.c.l.b16 %v47
    %v108 = vunpack.c.h.b16 %v47
    %v109 = vunpack.c.l.b16 %v48
    %v110 = vunpack.c.h.b16 %v48
    %v111 = vunpack.c.l.b16 %v49
    %v112 = vunpack.c.h.b16 %v49
    %v113 = vunpack.c.l.b16 %v50
    %v114 = vunpack.c.h.b16 %v50
    %v115 = vunpack.c.l.b16 %v51
    %v116 = vunpack.c.h.b16 %v51
    %v117 = vunpack.c.l.b16 %v52
    %v118 = vunpack.c.h.b16 %v52
    %v119 = vunpack.c.l.b16 %v53
    %v120 = vunpack.c.h.b16 %v53
    %v121 = vunpack.c.l.b16 %v54
    %v122 = vunpack.c.h.b16 %v54
    %v123 = vunpack.c.l.b16 %v55
    %v124 = vunpack.c.h.b16 %v55
    %v125 = vunpack.c.l.b16 %v56
    %v126 = vunpack.c.h.b16 %v56
    %v127 = vpack.c.b16 %v99, %v95
    %v128 = vpack.c.b16 %v100, %v96
    %v129 = vpack.c.b16 %v101, %v97
    %v130 = vpack.c.b16 %v102, %v98
    %v131 = vpack.c.b16 %v107, %v103
    %v132 = vpack.c.b16 %v108, %v104
    %v133 = vpack.c.b16 %v109, %v105
    %v134 = vpack.c.b16 %v110, %v106
    %v135 = vpack.c.b16 %v115, %v111
    %v136 = vpack.c.b16 %v116, %v112
    %v137 = vpack.c.b16 %v117, %v113
    %v138 = vpack.c.b16 %v118, %v114
    %v139 = vpack.c.b16 %v123, %v119
    %v140 = vpack.c.b16 %v124, %v120
    %v141 = vpack.c.b16 %v125, %v121
    %v142 = vpack.c.b16 %v126, %v122
    %vm159 = vcmask 523264
    %v161 = vsel %vm159, %v40, 0
    %163 = vmatprep.subr.bf16.mxu0 %v128
    %164 = vmatpush1.bf16.msra.mxu0 %v127
    %165 = vmatprep.subr.bf16.mxu0 %v132
    %166 = vmatpush1.bf16.msra.mxu0 %v131
    %167 = vmatprep.subr.bf16.mxu0 %v136
    %168 = vmatpush1.bf16.msra.mxu0 %v135
    %169 = vmatprep.subr.bf16.mxu0 %v140
    %170 = vmatpush1.bf16.msra.mxu0 %v139
    %171 = vmatprep.subr.bf16.mxu0 0
    %172 = vmatpush1.bf16.msra.mxu0 0
    %173 = vmatprep.subr.bf16.mxu0 0
    %174 = vmatpush1.bf16.msra.mxu0 0
    %175 = vmatprep.subr.bf16.mxu0 0
    %176 = vmatpush1.bf16.msra.mxu0 0
    %177 = vmatprep.subr.bf16.mxu0 0
    %178 = vmatpush1.bf16.msra.mxu0 0
    %179 = vmatprep.subr.bf16.mxu0 0
    %180 = vmatpush1.bf16.msra.mxu0 0
    %181 = vmatprep.subr.bf16.mxu0 0
    %182 = vmatpush1.bf16.msra.mxu0 0
    %183 = vmatprep.subr.bf16.mxu0 0
    %184 = vmatpush1.bf16.msra.mxu0 0
    %185 = vmatprep.subr.bf16.mxu0 0
    %186 = vmatpush1.bf16.msra.mxu0 0
    %187 = vmatprep.subr.bf16.mxu0 0
    %188 = vmatpush1.bf16.msra.mxu0 0
    %189 = vmatprep.subr.bf16.mxu0 0
    %190 = vmatpush1.bf16.msra.mxu0 0
    %191 = vmatprep.subr.bf16.mxu0 0
    %192 = vmatpush1.bf16.msra.mxu0 0
    %193 = vmatprep.subr.bf16.mxu0 0
    %194 = vmatpush1.bf16.msra.mxu0 0
    %195 = vmatprep.mubr.bf16.mxu0 0
    %196 = vmatmul.mubr.bf16.gmra.mrb[0].mxu0 %v161
    %v197 = vpop.f32.mrb[0].mxu0
    %v198 = vadd.f32 %v62, %v197
    %v199 = vpop.f32.mrb[0].mxu0
    %v200 = vadd.f32 %v66, %v199
    %v201 = vpop.f32.mrb[0].mxu0
    %v202 = vpop.f32.mrb[0].mxu0
    %203 = vdwg.mxu0
    %204 = vmatprep.subr.bf16.mxu0 %v130
    %205 = vmatpush1.bf16.msra.mxu0 %v129
    %206 = vmatprep.subr.bf16.mxu0 %v134
    %207 = vmatpush1.bf16.msra.mxu0 %v133
    %208 = vmatprep.subr.bf16.mxu0 %v138
    %209 = vmatpush1.bf16.msra.mxu0 %v137
    %210 = vmatprep.subr.bf16.mxu0 %v142
    %211 = vmatpush1.bf16.msra.mxu0 %v141
    %212 = vmatprep.subr.bf16.mxu0 0
    %213 = vmatpush1.bf16.msra.mxu0 0
    %214 = vmatprep.subr.bf16.mxu0 0
    %215 = vmatpush1.bf16.msra.mxu0 0
    %216 = vmatprep.subr.bf16.mxu0 0
    %217 = vmatpush1.bf16.msra.mxu0 0
    %218 = vmatprep.subr.bf16.mxu0 0
    %219 = vmatpush1.bf16.msra.mxu0 0
    %220 = vmatprep.subr.bf16.mxu0 0
    %221 = vmatpush1.bf16.msra.mxu0 0
    %222 = vmatprep.subr.bf16.mxu0 0
    %223 = vmatpush1.bf16.msra.mxu0 0
    %224 = vmatprep.subr.bf16.mxu0 0
    %225 = vmatpush1.bf16.msra.mxu0 0
    %226 = vmatprep.subr.bf16.mxu0 0
    %227 = vmatpush1.bf16.msra.mxu0 0
    %228 = vmatprep.subr.bf16.mxu0 0
    %229 = vmatpush1.bf16.msra.mxu0 0
    %230 = vmatprep.subr.bf16.mxu0 0
    %231 = vmatpush1.bf16.msra.mxu0 0
    %232 = vmatprep.subr.bf16.mxu0 0
    %233 = vmatpush1.bf16.msra.mxu0 0
    %234 = vmatprep.subr.bf16.mxu0 0
    %235 = vmatpush1.bf16.msra.mxu0 0
    %236 = vmatprep.mubr.bf16.mxu0 0
    %237 = vmatmul.mubr.bf16.gmra.mrb[0].mxu0 %v161
    %v238 = vpop.f32.mrb[0].mxu0
    %v239 = vadd.f32 %v70, %v238
    %v240 = vpop.f32.mrb[0].mxu0
    %v241 = vadd.f32 %v74, %v240
    %v242 = vpop.f32.mrb[0].mxu0
    %v243 = vpop.f32.mrb[0].mxu0
    %244 = vdwg.mxu0
    %v245 = vmax.f32 %v198, 0.0
    %v246 = vmax.f32 %v200, 0.0
    %v247 = vmax.f32 %v239, 0.0
    %v248 = vmax.f32 %v241, 0.0
    %v249 = vld [vmem:[%s3] sm:$0xff]
    %v250 = vld [vmem:[%s3 + $0x8] sm:$0xff]
    %v251 = vld [vmem:[%s3 + $0x10] sm:$0xff]
    %v252 = vld [vmem:[%s3 + $0x18] sm:$0xff]
    %v253 = vld [vmem:[%s3 + $0x20] sm:$0xff]
    %v254 = vld [vmem:[%s3 + $0x28] sm:$0xff]
    %v255 = vld [vmem:[%s3 + $0x30] sm:$0xff]
    %v256 = vld [vmem:[%s3 + $0x38] sm:$0xff]
    %v257 = vld [vmem:[%s3 + $0x40] sm:$0xff]
    %v258 = vld [vmem:[%s3 + $0x48] sm:$0xff]
    %v259 = vld [vmem:[%s3 + $0x50] sm:$0xff]
    %v260 = vld [vmem:[%s3 + $0x58] sm:$0xff]
    %v261 = vld [vmem:[%s3 + $0x60] sm:$0xff]
    %v262 = vld [vmem:[%s3 + $0x68] sm:$0xff]
    %v263 = vld [vmem:[%s3 + $0x70] sm:$0xff]
    %v264 = vld [vmem:[%s3 + $0x78] sm:$0xff]
    %v265 = vld [vmem:[%s3 + $0x80] sm:$0xff]
    %v266 = vld [vmem:[%s3 + $0x88] sm:$0xff]
    %v267 = vld [vmem:[%s3 + $0x90] sm:$0xff]
    %v268 = vld [vmem:[%s3 + $0x98] sm:$0xff]
    %v269 = vld [vmem:[%s3 + $0xa0] sm:$0xff]
    %v270 = vld [vmem:[%s3 + $0xa8] sm:$0xff]
    %v271 = vld [vmem:[%s3 + $0xb0] sm:$0xff]
    %v272 = vld [vmem:[%s3 + $0xb8] sm:$0xff]
    %v273 = vld [vmem:[%s3 + $0xc0] sm:$0xff]
    %v274 = vld [vmem:[%s3 + $0xc8] sm:$0xff]
    %v275 = vld [vmem:[%s3 + $0xd0] sm:$0xff]
    %v276 = vld [vmem:[%s3 + $0xd8] sm:$0xff]
    %v277 = vld [vmem:[%s3 + $0xe0] sm:$0xff]
    %v278 = vld [vmem:[%s3 + $0xe8] sm:$0xff]
    %v279 = vld [vmem:[%s3 + $0xf0] sm:$0xff]
    %v280 = vld [vmem:[%s3 + $0xf8] sm:$0xff]
    %v281 = vld [vmem:[%s3 + $0x100] sm:$0xff]
    %v282 = vld [vmem:[%s3 + $0x108] sm:$0xff]
    %v283 = vld [vmem:[%s3 + $0x110] sm:$0xff]
    %v284 = vld [vmem:[%s3 + $0x118] sm:$0xff]
    %v285 = vld [vmem:[%s3 + $0x120] sm:$0xff]
    %v286 = vld [vmem:[%s3 + $0x128] sm:$0xff]
    %v287 = vld [vmem:[%s3 + $0x130] sm:$0xff]
    %v288 = vld [vmem:[%s3 + $0x138] sm:$0xff]
    %v289 = vld [vmem:[%s3 + $0x140] sm:$0xff]
    %v290 = vld [vmem:[%s3 + $0x148] sm:$0xff]
    %v291 = vld [vmem:[%s3 + $0x150] sm:$0xff]
    %v292 = vld [vmem:[%s3 + $0x158] sm:$0xff]
    %v293 = vld [vmem:[%s3 + $0x160] sm:$0xff]
    %v294 = vld [vmem:[%s3 + $0x168] sm:$0xff]
    %v295 = vld [vmem:[%s3 + $0x170] sm:$0xff]
    %v296 = vld [vmem:[%s3 + $0x178] sm:$0xff]
    %v297 = vld [vmem:[%s3 + $0x180] sm:$0xff]
    %v298 = vld [vmem:[%s3 + $0x188] sm:$0xff]
    %v299 = vld [vmem:[%s3 + $0x190] sm:$0xff]
    %v300 = vld [vmem:[%s3 + $0x198] sm:$0xff]
    %v301 = vld [vmem:[%s3 + $0x1a0] sm:$0xff]
    %v302 = vld [vmem:[%s3 + $0x1a8] sm:$0xff]
    %v303 = vld [vmem:[%s3 + $0x1b0] sm:$0xff]
    %v304 = vld [vmem:[%s3 + $0x1b8] sm:$0xff]
    %v305 = vld [vmem:[%s3 + $0x1c0] sm:$0xff]
    %v306 = vld [vmem:[%s3 + $0x1c8] sm:$0xff]
    %v307 = vld [vmem:[%s3 + $0x1d0] sm:$0xff]
    %v308 = vld [vmem:[%s3 + $0x1d8] sm:$0xff]
    %v309 = vld [vmem:[%s3 + $0x1e0] sm:$0xff]
    %v310 = vld [vmem:[%s3 + $0x1e8] sm:$0xff]
    %v311 = vld [vmem:[%s3 + $0x1f0] sm:$0xff]
    %v312 = vld [vmem:[%s3 + $0x1f8] sm:$0xff]
    %v313 = vld [vmem:[%s4] sm:$0x1]
    %v315 = vlaneseq
    %v316 = vshrl.u32 %v315, 7
    %v317 = vsub.s32 0, %v316
    %v318 = vrot.slane %v313, %v317
    %320 = vmatprep.subr.mxu0 0.0
    %321 = vmatpush1.msra.mxu0 %v249
    %322 = vmatprep.subr.mxu0 0.0
    %323 = vmatpush1.msra.mxu0 %v250
    %324 = vmatprep.subr.mxu0 0.0
    %325 = vmatpush1.msra.mxu0 %v251
    %326 = vmatprep.subr.mxu0 0.0
    %327 = vmatpush1.msra.mxu0 %v252
    %328 = vmatprep.subr.mxu0 0.0
    %329 = vmatpush1.msra.mxu0 %v253
    %330 = vmatprep.subr.mxu0 0.0
    %331 = vmatpush1.msra.mxu0 %v254
    %332 = vmatprep.subr.mxu0 0.0
    %333 = vmatpush1.msra.mxu0 %v255
    %334 = vmatprep.subr.mxu0 0.0
    %335 = vmatpush1.msra.mxu0 %v256
    %336 = vmatprep.subr.mxu0 0.0
    %337 = vmatpush1.msra.mxu0 %v257
    %338 = vmatprep.subr.mxu0 0.0
    %339 = vmatpush1.msra.mxu0 %v258
    %340 = vmatprep.subr.mxu0 0.0
    %341 = vmatpush1.msra.mxu0 %v259
    %342 = vmatprep.subr.mxu0 0.0
    %343 = vmatpush1.msra.mxu0 %v260
    %344 = vmatprep.subr.mxu0 0.0
    %345 = vmatpush1.msra.mxu0 %v261
    %346 = vmatprep.subr.mxu0 0.0
    %347 = vmatpush1.msra.mxu0 %v262
    %348 = vmatprep.subr.mxu0 0.0
    %349 = vmatpush1.msra.mxu0 %v263
    %350 = vmatprep.subr.mxu0 0.0
    %351 = vmatpush1.msra.mxu0 %v264
    %352 = vmatprep.subr.mxu0 0.0
    %353 = vmatpush1.msra.mxu0 %v265
    %354 = vmatprep.subr.mxu0 0.0
    %355 = vmatpush1.msra.mxu0 %v266
    %356 = vmatprep.subr.mxu0 0.0
    %357 = vmatpush1.msra.mxu0 %v267
    %358 = vmatprep.subr.mxu0 0.0
    %359 = vmatpush1.msra.mxu0 %v268
    %360 = vmatprep.subr.mxu0 0.0
    %361 = vmatpush1.msra.mxu0 %v269
    %362 = vmatprep.subr.mxu0 0.0
    %363 = vmatpush1.msra.mxu0 %v270
    %364 = vmatprep.subr.mxu0 0.0
    %365 = vmatpush1.msra.mxu0 %v271
    %366 = vmatprep.subr.mxu0 0.0
    %367 = vmatpush1.msra.mxu0 %v272
    %368 = vmatprep.subr.mxu0 0.0
    %369 = vmatpush1.msra.mxu0 %v273
    %370 = vmatprep.subr.mxu0 0.0
    %371 = vmatpush1.msra.mxu0 %v274
    %372 = vmatprep.subr.mxu0 0.0
    %373 = vmatpush1.msra.mxu0 %v275
    %374 = vmatprep.subr.mxu0 0.0
    %375 = vmatpush1.msra.mxu0 %v276
    %376 = vmatprep.subr.mxu0 0.0
    %377 = vmatpush1.msra.mxu0 %v277
    %378 = vmatprep.subr.mxu0 0.0
    %379 = vmatpush1.msra.mxu0 %v278
    %380 = vmatprep.subr.mxu0 0.0
    %381 = vmatpush1.msra.mxu0 %v279
    %382 = vmatprep.subr.mxu0 0.0
    %383 = vmatpush1.msra.mxu0 %v280
    %384 = vmatprep.mubr.f32.mxu0 %v246
    %385 = vmatmul.mubr.f32.gmra.mrb[0].mxu0 %v245
    %v386 = vpop.f32.mrb[0].mxu0
    %v387 = vadd.f32 %v318, %v386
    %v388 = vpop.f32.mrb[0].mxu0
    %389 = vdwg.mxu0
    %390 = vmatprep.subr.mxu0 0.0
    %391 = vmatpush1.msra.mxu0 %v281
    %392 = vmatprep.subr.mxu0 0.0
    %393 = vmatpush1.msra.mxu0 %v282
    %394 = vmatprep.subr.mxu0 0.0
    %395 = vmatpush1.msra.mxu0 %v283
    %396 = vmatprep.subr.mxu0 0.0
    %397 = vmatpush1.msra.mxu0 %v284
    %398 = vmatprep.subr.mxu0 0.0
    %399 = vmatpush1.msra.mxu0 %v285
    %400 = vmatprep.subr.mxu0 0.0
    %401 = vmatpush1.msra.mxu0 %v286
    %402 = vmatprep.subr.mxu0 0.0
    %403 = vmatpush1.msra.mxu0 %v287
    %404 = vmatprep.subr.mxu0 0.0
    %405 = vmatpush1.msra.mxu0 %v288
    %406 = vmatprep.subr.mxu0 0.0
    %407 = vmatpush1.msra.mxu0 %v289
    %408 = vmatprep.subr.mxu0 0.0
    %409 = vmatpush1.msra.mxu0 %v290
    %410 = vmatprep.subr.mxu0 0.0
    %411 = vmatpush1.msra.mxu0 %v291
    %412 = vmatprep.subr.mxu0 0.0
    %413 = vmatpush1.msra.mxu0 %v292
    %414 = vmatprep.subr.mxu0 0.0
    %415 = vmatpush1.msra.mxu0 %v293
    %416 = vmatprep.subr.mxu0 0.0
    %417 = vmatpush1.msra.mxu0 %v294
    %418 = vmatprep.subr.mxu0 0.0
    %419 = vmatpush1.msra.mxu0 %v295
    %420 = vmatprep.subr.mxu0 0.0
    %421 = vmatpush1.msra.mxu0 %v296
    %422 = vmatprep.subr.mxu0 0.0
    %423 = vmatpush1.msra.mxu0 %v297
    %424 = vmatprep.subr.mxu0 0.0
    %425 = vmatpush1.msra.mxu0 %v298
    %426 = vmatprep.subr.mxu0 0.0
    %427 = vmatpush1.msra.mxu0 %v299
    %428 = vmatprep.subr.mxu0 0.0
    %429 = vmatpush1.msra.mxu0 %v300
    %430 = vmatprep.subr.mxu0 0.0
    %431 = vmatpush1.msra.mxu0 %v301
    %432 = vmatprep.subr.mxu0 0.0
    %433 = vmatpush1.msra.mxu0 %v302
    %434 = vmatprep.subr.mxu0 0.0
    %435 = vmatpush1.msra.mxu0 %v303
    %436 = vmatprep.subr.mxu0 0.0
    %437 = vmatpush1.msra.mxu0 %v304
    %438 = vmatprep.subr.mxu0 0.0
    %439 = vmatpush1.msra.mxu0 %v305
    %440 = vmatprep.subr.mxu0 0.0
    %441 = vmatpush1.msra.mxu0 %v306
    %442 = vmatprep.subr.mxu0 0.0
    %443 = vmatpush1.msra.mxu0 %v307
    %444 = vmatprep.subr.mxu0 0.0
    %445 = vmatpush1.msra.mxu0 %v308
    %446 = vmatprep.subr.mxu0 0.0
    %447 = vmatpush1.msra.mxu0 %v309
    %448 = vmatprep.subr.mxu0 0.0
    %449 = vmatpush1.msra.mxu0 %v310
    %450 = vmatprep.subr.mxu0 0.0
    %451 = vmatpush1.msra.mxu0 %v311
    %452 = vmatprep.subr.mxu0 0.0
    %453 = vmatpush1.msra.mxu0 %v312
    %454 = vmatprep.mubr.f32.mxu0 %v248
    %455 = vmatmul.mubr.f32.gmra.mrb[0].mxu0 %v247
    %v456 = vpop.f32.mrb[0].mxu0
    %v457 = vadd.f32 %v387, %v456
    %v458 = vpop.f32.mrb[0].mxu0
    %459 = vdwg.mxu0
    %v460 = vld [vmem:[%s9] sm:$0xf]
    %v461 = vmul.f32 %v457, 0.5
    %v462 = vmul.f32 %v461, 1.442695
    %v463 = vpow.pop %v462
    %465 = vrot.lane.b32.xlu0 %v463, 112
    %v466 = vpop.permute.xlu0 %465
    %v468 = vmul.f32 %v460, %v466
    %v469 = vadd.f32 %v457, %v468
    %v470 = vpack.c.bf16 %v469, %v469
    %v471 = vld [vmem:[%s5] sm:$0xff]
    %v472 = vld [vmem:[%s5 + $0x8] sm:$0xff]
    %v473 = vld [vmem:[%s5 + $0x10] sm:$0xff]
    %v474 = vld [vmem:[%s5 + $0x18] sm:$0xff]
    %v475 = vld [vmem:[%s6] sm:$0xf]
    %v477 = vlaneseq
    %v478 = vshrl.u32 %v477, 7
    %v479 = vsub.s32 0, %v478
    %v480 = vrot.slane %v475, %v479
    %v481 = vlaneseq
    %v482 = vshrl.u32 %v481, 7
    %v483 = vsub.s32 1, %v482
    %v484 = vrot.slane %v475, %v483
    %v485 = vlaneseq
    %v486 = vshrl.u32 %v485, 7
    %v487 = vsub.s32 2, %v486
    %v488 = vrot.slane %v475, %v487
    %v489 = vlaneseq
    %v490 = vshrl.u32 %v489, 7
    %v491 = vsub.s32 3, %v490
    %v492 = vrot.slane %v475, %v491
    %v501 = vunpack.c.l.b16 %v471
    %v502 = vunpack.c.h.b16 %v471
    %v503 = vunpack.c.l.b16 %v472
    %v504 = vunpack.c.h.b16 %v472
    %v505 = vunpack.c.l.b16 %v473
    %v506 = vunpack.c.h.b16 %v473
    %v507 = vunpack.c.l.b16 %v474
    %v508 = vunpack.c.h.b16 %v474
    %v509 = vpack.c.b16 %v505, %v501
    %v510 = vpack.c.b16 %v506, %v502
    %v511 = vpack.c.b16 %v507, %v503
    %v512 = vpack.c.b16 %v508, %v504
    %vm517 = vcmask 130048
    %v519 = vsel %vm517, %v470, 0
    %521 = vmatprep.subr.bf16.mxu0 %v510
    %522 = vmatpush1.bf16.msra.mxu0 %v509
    %523 = vmatprep.subr.bf16.mxu0 0
    %524 = vmatpush1.bf16.msra.mxu0 0
    %525 = vmatprep.subr.bf16.mxu0 0
    %526 = vmatpush1.bf16.msra.mxu0 0
    %527 = vmatprep.subr.bf16.mxu0 0
    %528 = vmatpush1.bf16.msra.mxu0 0
    %529 = vmatprep.subr.bf16.mxu0 0
    %530 = vmatpush1.bf16.msra.mxu0 0
    %531 = vmatprep.subr.bf16.mxu0 0
    %532 = vmatpush1.bf16.msra.mxu0 0
    %533 = vmatprep.subr.bf16.mxu0 0
    %534 = vmatpush1.bf16.msra.mxu0 0
    %535 = vmatprep.subr.bf16.mxu0 0
    %536 = vmatpush1.bf16.msra.mxu0 0
    %537 = vmatprep.subr.bf16.mxu0 0
    %538 = vmatpush1.bf16.msra.mxu0 0
    %539 = vmatprep.subr.bf16.mxu0 0
    %540 = vmatpush1.bf16.msra.mxu0 0
    %541 = vmatprep.subr.bf16.mxu0 0
    %542 = vmatpush1.bf16.msra.mxu0 0
    %543 = vmatprep.subr.bf16.mxu0 0
    %544 = vmatpush1.bf16.msra.mxu0 0
    %545 = vmatprep.subr.bf16.mxu0 0
    %546 = vmatpush1.bf16.msra.mxu0 0
    %547 = vmatprep.subr.bf16.mxu0 0
    %548 = vmatpush1.bf16.msra.mxu0 0
    %549 = vmatprep.subr.bf16.mxu0 0
    %550 = vmatpush1.bf16.msra.mxu0 0
    %551 = vmatprep.subr.bf16.mxu0 0
    %552 = vmatpush1.bf16.msra.mxu0 0
    %553 = vmatprep.mubr.bf16.mxu0 0
    %554 = vmatmul.mubr.bf16.gmra.mrb[0].mxu0 %v519
    %v555 = vpop.f32.mrb[0].mxu0
    %v556 = vadd.f32 %v480, %v555
    %v557 = vpop.f32.mrb[0].mxu0
    %v558 = vadd.f32 %v484, %v557
    %v559 = vpop.f32.mrb[0].mxu0
    %v560 = vpop.f32.mrb[0].mxu0
    %561 = vdwg.mxu0
    %562 = vmatprep.subr.bf16.mxu0 %v512
    %563 = vmatpush1.bf16.msra.mxu0 %v511
    %564 = vmatprep.subr.bf16.mxu0 0
    %565 = vmatpush1.bf16.msra.mxu0 0
    %566 = vmatprep.subr.bf16.mxu0 0
    %567 = vmatpush1.bf16.msra.mxu0 0
    %568 = vmatprep.subr.bf16.mxu0 0
    %569 = vmatpush1.bf16.msra.mxu0 0
    %570 = vmatprep.subr.bf16.mxu0 0
    %571 = vmatpush1.bf16.msra.mxu0 0
    %572 = vmatprep.subr.bf16.mxu0 0
    %573 = vmatpush1.bf16.msra.mxu0 0
    %574 = vmatprep.subr.bf16.mxu0 0
    %575 = vmatpush1.bf16.msra.mxu0 0
    %576 = vmatprep.subr.bf16.mxu0 0
    %577 = vmatpush1.bf16.msra.mxu0 0
    %578 = vmatprep.subr.bf16.mxu0 0
    %579 = vmatpush1.bf16.msra.mxu0 0
    %580 = vmatprep.subr.bf16.mxu0 0
    %581 = vmatpush1.bf16.msra.mxu0 0
    %582 = vmatprep.subr.bf16.mxu0 0
    %583 = vmatpush1.bf16.msra.mxu0 0
    %584 = vmatprep.subr.bf16.mxu0 0
    %585 = vmatpush1.bf16.msra.mxu0 0
    %586 = vmatprep.subr.bf16.mxu0 0
    %587 = vmatpush1.bf16.msra.mxu0 0
    %588 = vmatprep.subr.bf16.mxu0 0
    %589 = vmatpush1.bf16.msra.mxu0 0
    %590 = vmatprep.subr.bf16.mxu0 0
    %591 = vmatpush1.bf16.msra.mxu0 0
    %592 = vmatprep.subr.bf16.mxu0 0
    %593 = vmatpush1.bf16.msra.mxu0 0
    %594 = vmatprep.mubr.bf16.mxu0 0
    %595 = vmatmul.mubr.bf16.gmra.mrb[0].mxu0 %v519
    %v596 = vpop.f32.mrb[0].mxu0
    %v597 = vadd.f32 %v488, %v596
    %v598 = vpop.f32.mrb[0].mxu0
    %v599 = vadd.f32 %v492, %v598
    %v600 = vpop.f32.mrb[0].mxu0
    %v601 = vpop.f32.mrb[0].mxu0
    %602 = vdwg.mxu0
    %v603 = vmax.f32 %v556, 0.0
    %v604 = vmax.f32 %v558, 0.0
    %v605 = vmax.f32 %v597, 0.0
    %v606 = vmax.f32 %v599, 0.0
    %v607 = vpack.c.bf16 %v603, %v603
    %v608 = vpack.c.bf16 %v604, %v604
    %v609 = vpack.c.bf16 %v605, %v605
    %v610 = vpack.c.bf16 %v606, %v606
    %v611 = vld [vmem:[%s7] sm:$0xf]
    %v612 = vld [vmem:[%s7 + $0x4] sm:$0xf]
    %v613 = vld [vmem:[%s7 + $0x8] sm:$0xf]
    %v614 = vld [vmem:[%s7 + $0xc] sm:$0xf]
    %v615 = vld [vmem:[%s7 + $0x10] sm:$0xf]
    %v616 = vld [vmem:[%s7 + $0x14] sm:$0xf]
    %v617 = vld [vmem:[%s7 + $0x18] sm:$0xf]
    %v618 = vld [vmem:[%s7 + $0x1c] sm:$0xf]
    %v619 = vld [vmem:[%s7 + $0x20] sm:$0xf]
    %v620 = vld [vmem:[%s7 + $0x24] sm:$0xf]
    %v621 = vld [vmem:[%s7 + $0x28] sm:$0xf]
    %v622 = vld [vmem:[%s7 + $0x2c] sm:$0xf]
    %v623 = vld [vmem:[%s7 + $0x30] sm:$0xf]
    %v624 = vld [vmem:[%s7 + $0x34] sm:$0xf]
    %v625 = vld [vmem:[%s7 + $0x38] sm:$0xf]
    %v626 = vld [vmem:[%s7 + $0x3c] sm:$0xf]
    %v627 = vld [vmem:[%s7 + $0x40] sm:$0xf]
    %v628 = vld [vmem:[%s7 + $0x44] sm:$0xf]
    %v629 = vld [vmem:[%s7 + $0x48] sm:$0xf]
    %v630 = vld [vmem:[%s7 + $0x4c] sm:$0xf]
    %v631 = vld [vmem:[%s7 + $0x50] sm:$0xf]
    %v632 = vld [vmem:[%s7 + $0x54] sm:$0xf]
    %v633 = vld [vmem:[%s7 + $0x58] sm:$0xf]
    %v634 = vld [vmem:[%s7 + $0x5c] sm:$0xf]
    %v635 = vld [vmem:[%s7 + $0x60] sm:$0xf]
    %v636 = vld [vmem:[%s7 + $0x64] sm:$0xf]
    %v637 = vld [vmem:[%s7 + $0x68] sm:$0xf]
    %v638 = vld [vmem:[%s7 + $0x6c] sm:$0xf]
    %v639 = vld [vmem:[%s7 + $0x70] sm:$0xf]
    %v640 = vld [vmem:[%s7 + $0x74] sm:$0xf]
    %v641 = vld [vmem:[%s7 + $0x78] sm:$0xf]
    %v642 = vld [vmem:[%s7 + $0x7c] sm:$0xf]
    %v643 = vld [vmem:[%s7 + $0x80] sm:$0xf]
    %v644 = vld [vmem:[%s7 + $0x84] sm:$0xf]
    %v645 = vld [vmem:[%s7 + $0x88] sm:$0xf]
    %v646 = vld [vmem:[%s7 + $0x8c] sm:$0xf]
    %v647 = vld [vmem:[%s7 + $0x90] sm:$0xf]
    %v648 = vld [vmem:[%s7 + $0x94] sm:$0xf]
    %v649 = vld [vmem:[%s7 + $0x98] sm:$0xf]
    %v650 = vld [vmem:[%s7 + $0x9c] sm:$0xf]
    %v651 = vld [vmem:[%s7 + $0xa0] sm:$0xf]
    %v652 = vld [vmem:[%s7 + $0xa4] sm:$0xf]
    %v653 = vld [vmem:[%s7 + $0xa8] sm:$0xf]
    %v654 = vld [vmem:[%s7 + $0xac] sm:$0xf]
    %v655 = vld [vmem:[%s7 + $0xb0] sm:$0xf]
    %v656 = vld [vmem:[%s7 + $0xb4] sm:$0xf]
    %v657 = vld [vmem:[%s7 + $0xb8] sm:$0xf]
    %v658 = vld [vmem:[%s7 + $0xbc] sm:$0xf]
    %v659 = vld [vmem:[%s7 + $0xc0] sm:$0xf]
    %v660 = vld [vmem:[%s7 + $0xc4] sm:$0xf]
    %v661 = vld [vmem:[%s7 + $0xc8] sm:$0xf]
    %v662 = vld [vmem:[%s7 + $0xcc] sm:$0xf]
    %v663 = vld [vmem:[%s7 + $0xd0] sm:$0xf]
    %v664 = vld [vmem:[%s7 + $0xd4] sm:$0xf]
    %v665 = vld [vmem:[%s7 + $0xd8] sm:$0xf]
    %v666 = vld [vmem:[%s7 + $0xdc] sm:$0xf]
    %v667 = vld [vmem:[%s7 + $0xe0] sm:$0xf]
    %v668 = vld [vmem:[%s7 + $0xe4] sm:$0xf]
    %v669 = vld [vmem:[%s7 + $0xe8] sm:$0xf]
    %v670 = vld [vmem:[%s7 + $0xec] sm:$0xf]
    %v671 = vld [vmem:[%s7 + $0xf0] sm:$0xf]
    %v672 = vld [vmem:[%s7 + $0xf4] sm:$0xf]
    %v673 = vld [vmem:[%s7 + $0xf8] sm:$0xf]
    %v674 = vld [vmem:[%s7 + $0xfc] sm:$0xf]
    %v675 = vld [vmem:[%s8] sm:$0x1]
    %v677 = vlaneseq
    %v678 = vshrl.u32 %v677, 7
    %v679 = vsub.s32 0, %v678
    %v680 = vrot.slane %v675, %v679
    %v746 = vunpack.c.l.b16 %v611
    %v747 = vunpack.c.l.b16 %v612
    %v748 = vunpack.c.l.b16 %v613
    %v749 = vunpack.c.l.b16 %v614
    %v750 = vunpack.c.l.b16 %v615
    %v751 = vunpack.c.l.b16 %v616
    %v752 = vunpack.c.l.b16 %v617
    %v753 = vunpack.c.l.b16 %v618
    %v754 = vunpack.c.l.b16 %v619
    %v755 = vunpack.c.l.b16 %v620
    %v756 = vunpack.c.l.b16 %v621
    %v757 = vunpack.c.l.b16 %v622
    %v758 = vunpack.c.l.b16 %v623
    %v759 = vunpack.c.l.b16 %v624
    %v760 = vunpack.c.l.b16 %v625
    %v761 = vunpack.c.l.b16 %v626
    %v762 = vunpack.c.l.b16 %v627
    %v763 = vunpack.c.l.b16 %v628
    %v764 = vunpack.c.l.b16 %v629
    %v765 = vunpack.c.l.b16 %v630
    %v766 = vunpack.c.l.b16 %v631
    %v767 = vunpack.c.l.b16 %v632
    %v768 = vunpack.c.l.b16 %v633
    %v769 = vunpack.c.l.b16 %v634
    %v770 = vunpack.c.l.b16 %v635
    %v771 = vunpack.c.l.b16 %v636
    %v772 = vunpack.c.l.b16 %v637
    %v773 = vunpack.c.l.b16 %v638
    %v774 = vunpack.c.l.b16 %v639
    %v775 = vunpack.c.l.b16 %v640
    %v776 = vunpack.c.l.b16 %v641
    %v777 = vunpack.c.l.b16 %v642
    %v778 = vunpack.c.l.b16 %v643
    %v779 = vunpack.c.l.b16 %v644
    %v780 = vunpack.c.l.b16 %v645
    %v781 = vunpack.c.l.b16 %v646
    %v782 = vunpack.c.l.b16 %v647
    %v783 = vunpack.c.l.b16 %v648
    %v784 = vunpack.c.l.b16 %v649
    %v785 = vunpack.c.l.b16 %v650
    %v786 = vunpack.c.l.b16 %v651
    %v787 = vunpack.c.l.b16 %v652
    %v788 = vunpack.c.l.b16 %v653
    %v789 = vunpack.c.l.b16 %v654
    %v790 = vunpack.c.l.b16 %v655
    %v791 = vunpack.c.l.b16 %v656
    %v792 = vunpack.c.l.b16 %v657
    %v793 = vunpack.c.l.b16 %v658
    %v794 = vunpack.c.l.b16 %v659
    %v795 = vunpack.c.l.b16 %v660
    %v796 = vunpack.c.l.b16 %v661
    %v797 = vunpack.c.l.b16 %v662
    %v798 = vunpack.c.l.b16 %v663
    %v799 = vunpack.c.l.b16 %v664
    %v800 = vunpack.c.l.b16 %v665
    %v801 = vunpack.c.l.b16 %v666
    %v802 = vunpack.c.l.b16 %v667
    %v803 = vunpack.c.l.b16 %v668
    %v804 = vunpack.c.l.b16 %v669
    %v805 = vunpack.c.l.b16 %v670
    %v806 = vunpack.c.l.b16 %v671
    %v807 = vunpack.c.l.b16 %v672
    %v808 = vunpack.c.l.b16 %v673
    %v809 = vunpack.c.l.b16 %v674
    %v810 = vpack.c.b16 %v747, %v746
    %v811 = vpack.c.b16 %v749, %v748
    %v812 = vpack.c.b16 %v751, %v750
    %v813 = vpack.c.b16 %v753, %v752
    %v814 = vpack.c.b16 %v755, %v754
    %v815 = vpack.c.b16 %v757, %v756
    %v816 = vpack.c.b16 %v759, %v758
    %v817 = vpack.c.b16 %v761, %v760
    %v818 = vpack.c.b16 %v763, %v762
    %v819 = vpack.c.b16 %v765, %v764
    %v820 = vpack.c.b16 %v767, %v766
    %v821 = vpack.c.b16 %v769, %v768
    %v822 = vpack.c.b16 %v771, %v770
    %v823 = vpack.c.b16 %v773, %v772
    %v824 = vpack.c.b16 %v775, %v774
    %v825 = vpack.c.b16 %v777, %v776
    %v826 = vpack.c.b16 %v779, %v778
    %v827 = vpack.c.b16 %v781, %v780
    %v828 = vpack.c.b16 %v783, %v782
    %v829 = vpack.c.b16 %v785, %v784
    %v830 = vpack.c.b16 %v787, %v786
    %v831 = vpack.c.b16 %v789, %v788
    %v832 = vpack.c.b16 %v791, %v790
    %v833 = vpack.c.b16 %v793, %v792
    %v834 = vpack.c.b16 %v795, %v794
    %v835 = vpack.c.b16 %v797, %v796
    %v836 = vpack.c.b16 %v799, %v798
    %v837 = vpack.c.b16 %v801, %v800
    %v838 = vpack.c.b16 %v803, %v802
    %v839 = vpack.c.b16 %v805, %v804
    %v840 = vpack.c.b16 %v807, %v806
    %v841 = vpack.c.b16 %v809, %v808
    %874 = vmatprep.subr.bf16.mxu0 0
    %875 = vmatpush1.bf16.msra.mxu0 %v810
    %876 = vmatprep.subr.bf16.mxu0 0
    %877 = vmatpush1.bf16.msra.mxu0 %v811
    %878 = vmatprep.subr.bf16.mxu0 0
    %879 = vmatpush1.bf16.msra.mxu0 %v812
    %880 = vmatprep.subr.bf16.mxu0 0
    %881 = vmatpush1.bf16.msra.mxu0 %v813
    %882 = vmatprep.subr.bf16.mxu0 0
    %883 = vmatpush1.bf16.msra.mxu0 %v814
    %884 = vmatprep.subr.bf16.mxu0 0
    %885 = vmatpush1.bf16.msra.mxu0 %v815
    %886 = vmatprep.subr.bf16.mxu0 0
    %887 = vmatpush1.bf16.msra.mxu0 %v816
    %888 = vmatprep.subr.bf16.mxu0 0
    %889 = vmatpush1.bf16.msra.mxu0 %v817
    %890 = vmatprep.subr.bf16.mxu0 0
    %891 = vmatpush1.bf16.msra.mxu0 %v818
    %892 = vmatprep.subr.bf16.mxu0 0
    %893 = vmatpush1.bf16.msra.mxu0 %v819
    %894 = vmatprep.subr.bf16.mxu0 0
    %895 = vmatpush1.bf16.msra.mxu0 %v820
    %896 = vmatprep.subr.bf16.mxu0 0
    %897 = vmatpush1.bf16.msra.mxu0 %v821
    %898 = vmatprep.subr.bf16.mxu0 0
    %899 = vmatpush1.bf16.msra.mxu0 %v822
    %900 = vmatprep.subr.bf16.mxu0 0
    %901 = vmatpush1.bf16.msra.mxu0 %v823
    %902 = vmatprep.subr.bf16.mxu0 0
    %903 = vmatpush1.bf16.msra.mxu0 %v824
    %904 = vmatprep.subr.bf16.mxu0 0
    %905 = vmatpush1.bf16.msra.mxu0 %v825
    %906 = vmatprep.mubr.bf16.mxu0 %v608
    %907 = vmatmul.mubr.bf16.gmra.mrb[0].mxu0 %v607
    %v908 = vpop.f32.mrb[0].mxu0
    %v909 = vadd.f32 %v680, %v908
    %v910 = vpop.f32.mrb[0].mxu0
    %v911 = vpop.f32.mrb[0].mxu0
    %v912 = vpop.f32.mrb[0].mxu0
    %913 = vdwg.mxu0
    %914 = vmatprep.subr.bf16.mxu0 0
    %915 = vmatpush1.bf16.msra.mxu0 %v826
    %916 = vmatprep.subr.bf16.mxu0 0
    %917 = vmatpush1.bf16.msra.mxu0 %v827
    %918 = vmatprep.subr.bf16.mxu0 0
    %919 = vmatpush1.bf16.msra.mxu0 %v828
    %920 = vmatprep.subr.bf16.mxu0 0
    %921 = vmatpush1.bf16.msra.mxu0 %v829
    %922 = vmatprep.subr.bf16.mxu0 0
    %923 = vmatpush1.bf16.msra.mxu0 %v830
    %924 = vmatprep.subr.bf16.mxu0 0
    %925 = vmatpush1.bf16.msra.mxu0 %v831
    %926 = vmatprep.subr.bf16.mxu0 0
    %927 = vmatpush1.bf16.msra.mxu0 %v832
    %928 = vmatprep.subr.bf16.mxu0 0
    %929 = vmatpush1.bf16.msra.mxu0 %v833
    %930 = vmatprep.subr.bf16.mxu0 0
    %931 = vmatpush1.bf16.msra.mxu0 %v834
    %932 = vmatprep.subr.bf16.mxu0 0
    %933 = vmatpush1.bf16.msra.mxu0 %v835
    %934 = vmatprep.subr.bf16.mxu0 0
    %935 = vmatpush1.bf16.msra.mxu0 %v836
    %936 = vmatprep.subr.bf16.mxu0 0
    %937 = vmatpush1.bf16.msra.mxu0 %v837
    %938 = vmatprep.subr.bf16.mxu0 0
    %939 = vmatpush1.bf16.msra.mxu0 %v838
    %940 = vmatprep.subr.bf16.mxu0 0
    %941 = vmatpush1.bf16.msra.mxu0 %v839
    %942 = vmatprep.subr.bf16.mxu0 0
    %943 = vmatpush1.bf16.msra.mxu0 %v840
    %944 = vmatprep.subr.bf16.mxu0 0
    %945 = vmatpush1.bf16.msra.mxu0 %v841
    %946 = vmatprep.mubr.bf16.mxu0 %v610
    %947 = vmatmul.mubr.bf16.gmra.mrb[0].mxu0 %v609
    %v948 = vpop.f32.mrb[0].mxu0
    %v949 = vadd.f32 %v909, %v948
    %v950 = vpop.f32.mrb[0].mxu0
    %v951 = vpop.f32.mrb[0].mxu0
    %v952 = vpop.f32.mrb[0].mxu0
    %953 = vdwg.mxu0
    %v954 = vsub.f32 0.0, %v949
    %v955 = vmul.f32 %v954, 1.442695
    %v956 = vpow.pop %v955
    %v957 = vadd.f32 %v956, 1.0
    %v958 = vrcp.pop %v957
    %vm959 = vcmask 519168
    %960 = vst.msk [vmem:[#allocation2] sm:$0xf] %vm959, %v958
    %vm961 = vcmask 257024
    %962 = vst.msk [vmem:[%s11] sm:$0xf] %vm961, %v457
    // Predicated region
    $region42: #{lvae_forward.1} parent=1 // pred_check
      _
    $region43: #{lvae_forward.1} parent=1 // pred_check_branch
      %964 = sbr.rel (0) target = $region45
    $region44: #{lvae_forward.1} parent=1 // pred_region
      %s966 = ssub.s32 64, 64
      %967 = vsyncadd [#allocation3], %s966
      %s969 = sshll.u32 [#allocation2], 4
      %s970 = int_to_ptr.vmem [resolvable:$true] %s969
      %972 = dma.vmem_to_hbm [thread:$0]  %s970, 64, %s10, [#allocation3]
    $region45: #{lvae_forward.1} parent=1 // pred_fallthru
      _
    // Predicated region
    $region46: #{lvae_forward.1} parent=1 // pred_check
      _
    $region47: #{lvae_forward.1} parent=1 // pred_check_branch
      %974 = sbr.rel (0) target = $region49
    $region48: #{lvae_forward.1} parent=1 // pred_region
      _
    $region49: #{lvae_forward.1} parent=1 // pred_fallthru
      _
    // Predicated region
    $region50: #{lvae_forward.1} parent=1 // pred_check
      _
    $region51: #{lvae_forward.1} parent=1 // pred_check_branch
      %976 = sbr.rel (0) target = $region53
    $region52: #{lvae_forward.1} parent=1 // pred_region
      %977 = dma.done [#allocation3], 64
    $region53: #{lvae_forward.1} parent=1 // pred_fallthru
      _
    // Predicated region
    $region54: #{lvae_forward.1} parent=1 // pred_check
      _
    $region55: #{lvae_forward.1} parent=1 // pred_check_branch
      %979 = sbr.rel (0) target = $region57
    $region56: #{lvae_forward.1} parent=1 // pred_region
      _
    $region57: #{lvae_forward.1} parent=1 // pred_fallthru
      _
    %980 = vsyncpa [#allocation3], 1

</llo_original>
